<compile_context>
chip_gen: v7x
topology: tpu7x:2x2x1
jax: 0.10.0
libtpu: 0.0.40
codegen_flags: <defaults>
</compile_context>

<pallas_src>
import jax
import jax.numpy as jnp
from jax.experimental import pallas as pl
from jax.experimental.pallas import tpu as pltpu


def kd_loss_kernel(x_ref, q_ref, o_ref):
    # One block = (tile_b, C): full class axis resident so the log-softmax
    # reduction stays inside the block. Compute in f32 regardless of input dtype.
    x = x_ref[...].astype(jnp.float32)
    q = q_ref[...].astype(jnp.float32)

    # numerically stable log_softmax along the class (lane) axis
    m = jnp.max(x, axis=-1, keepdims=True)
    shifted = x - m
    lse = jnp.log(jnp.sum(jnp.exp(shifted), axis=-1, keepdims=True))
    log_p = shifted - lse

    # KLDivLoss(reduction='none'), non-log target:
    #   target * (log(target) - log_p); zero where target <= 0.
    safe_q = jnp.where(q > 0, q, 1.0)  # avoid log(0) -> nan via 0 * -inf
    loss = jnp.where(q > 0, q * (jnp.log(safe_q) - log_p), 0.0)

    o_ref[...] = loss.astype(o_ref.dtype)


def _round_up(v, m):
    return ((v + m - 1) // m) * m


def kd_loss(x, q, *, max_tile_b=1024, block_budget_bytes=12 << 20):
    """x: logits (B, C); q: target probabilities (B, C). Returns elementwise loss (B, C)."""
    B, C = x.shape
    assert q.shape == (B, C)
    out_dtype = jnp.promote_types(x.dtype, q.dtype)

    x_b = jnp.dtype(x.dtype).itemsize
    q_b = jnp.dtype(q.dtype).itemsize
    o_b = jnp.dtype(out_dtype).itemsize
    row_align = 16 if min(x_b, q_b, o_b) < 4 else 8

    # --- fixed, modest per-block footprint -------------------------------------
    # Double-buffered I/O blocks (2 inputs + 1 output) plus ~4 f32 tile-sized
    # intermediates that Mosaic materializes inside the kernel.
    per_row_bytes = 2 * C * (x_b + q_b + o_b) + 4 * C * 4
    tile_b = max(row_align,
                 (block_budget_bytes // per_row_bytes) // row_align * row_align)
    tile_b = min(tile_b, max_tile_b, _round_up(B, row_align))

    # --- v7x megacore: prefer an even (>=2) number of grid steps ----------------
    steps = pl.cdiv(B, tile_b)
    max_steps = pl.cdiv(B, row_align)
    if max_steps >= 2 and steps % 2 == 1:
        target = min(max(2, steps + 1), max_steps)
        tile_b = _round_up(pl.cdiv(B, target), row_align)
        steps = pl.cdiv(B, tile_b)

    grid = (steps,)
    # Block last dim == full class axis (legal for any C, no padding needed);
    # the partial last batch block is padded/masked by Pallas automatically.
    spec = pl.BlockSpec((tile_b, C), lambda i: (i, 0))

    # --- VMEM limit: small blocks + intermediates + headroom --------------------
    try:
        vmem_cap = int(pltpu.get_tpu_info().vmem_capacity_bytes)
    except Exception:
        vmem_cap = 64 << 20  # conservative (v7x per-TC) fallback
    needed = tile_b * per_row_bytes
    vmem_limit = int(min(max(needed + (8 << 20), 32 << 20), vmem_cap))

    cost = pl.CostEstimate(
        flops=5 * B * C,
        transcendentals=2 * B * C,
        bytes_accessed=B * C * (x_b + q_b + o_b),
    )

    return pl.pallas_call(
        kd_loss_kernel,
        out_shape=jax.ShapeDtypeStruct((B, C), out_dtype),
        grid_spec=pltpu.PrefetchScalarGridSpec(
            num_scalar_prefetch=0,
            grid=grid,
            in_specs=[spec, spec],
            out_specs=spec,
        ),
        compiler_params=pltpu.CompilerParams(
            dimension_semantics=("parallel",),
            vmem_limit_bytes=vmem_limit,
        ),
        cost_estimate=cost,
    )(x, q)


def kd_loss_ref(x, q):
    """Pure-JAX reference with PyTorch KLDivLoss('none') semantics."""
    log_p = jax.nn.log_softmax(x.astype(jnp.float32), axis=1)
    qf = q.astype(jnp.float32)
    return jnp.where(qf > 0, qf * (jnp.log(jnp.where(qf > 0, qf, 1.0)) - log_p), 0.0)


if __name__ == "__main__":
    key = jax.random.PRNGKey(0)
    k1, k2, k3, k4 = jax.random.split(key, 4)

    # case 1: lane-aligned shapes
    B, C = 8, 128
    logits = jax.random.normal(k1, (B, C), dtype=jnp.float32)
    target = jax.nn.softmax(jax.random.normal(k2, (B, C), dtype=jnp.float32), axis=1)
    out = jax.block_until_ready(kd_loss(logits, target))
    ref = kd_loss_ref(logits, target)
    assert out.shape == (B, C)
    assert jnp.allclose(out, ref, atol=1e-5, rtol=1e-5), "mismatch vs reference (aligned)"

    # case 2: ragged shapes -> exercises ragged C (full-dim block) and partial batch block
    B2, C2 = 6, 100
    logits2 = jax.random.normal(k3, (B2, C2), dtype=jnp.float32)
    target2 = jax.nn.softmax(jax.random.normal(k4, (B2, C2), dtype=jnp.float32), axis=1)
    out2 = jax.block_until_ready(kd_loss(logits2, target2))
    ref2 = kd_loss_ref(logits2, target2)
    assert out2.shape == (B2, C2)
    assert jnp.allclose(out2, ref2, atol=1e-5, rtol=1e-5), "mismatch vs reference (ragged)"

    print("KERNEL_OK")
</pallas_src>

<mosaic_0001>
module attributes {stable_mosaic.version = 11 : i64} {
  func.func @kd_loss_kernel(%arg0: i32, %arg1: memref<8x128xf32, #tpu.memory_space<vmem>>, %arg2: memref<8x128xf32, #tpu.memory_space<vmem>>, %arg3: memref<8x128xf32, #tpu.memory_space<vmem>>) attributes {dimension_semantics = [#tpu.dimension_semantics<parallel>], iteration_bounds = array<i64: 1>, scalar_prefetch = 0 : i64, scratch_operands = 0 : i64, tpu.core_type = #tpu.core_type<tc>, window_params = [{transform_indices = @transform_0, window_bounds = array<i64: 8, 128>}, {transform_indices = @transform_1, window_bounds = array<i64: 8, 128>}, {transform_indices = @transform_2, window_bounds = array<i64: 8, 128>}]} {
    %c0 = arith.constant 0 : index
    %c0_0 = arith.constant 0 : index
    %0 = vector.load %arg1[%c0, %c0_0] : memref<8x128xf32, #tpu.memory_space<vmem>>, vector<8x128xf32>
    %c0_1 = arith.constant 0 : index
    %c0_2 = arith.constant 0 : index
    %1 = vector.load %arg2[%c0_1, %c0_2] : memref<8x128xf32, #tpu.memory_space<vmem>>, vector<8x128xf32>
    %cst = arith.constant dense<0xFF800000> : vector<8xf32>
    %2 = vector.multi_reduction <maximumf>, %0, %cst [1] : vector<8x128xf32> to vector<8xf32>
    %3 = vector.shape_cast %2 : vector<8xf32> to vector<8x1xf32>
    %4 = vector.broadcast %3 : vector<8x1xf32> to vector<8x128xf32>
    %5 = arith.subf %0, %4 : vector<8x128xf32>
    %6 = math.exp %5 : vector<8x128xf32>
    %cst_3 = arith.constant dense<0.000000e+00> : vector<8xf32>
    %7 = vector.multi_reduction <add>, %6, %cst_3 [1] : vector<8x128xf32> to vector<8xf32>
    %8 = vector.shape_cast %7 : vector<8xf32> to vector<8x1xf32>
    %9 = math.log %8 : vector<8x1xf32>
    %10 = vector.broadcast %9 : vector<8x1xf32> to vector<8x128xf32>
    %11 = arith.subf %5, %10 : vector<8x128xf32>
    %cst_4 = arith.constant 0.000000e+00 : f32
    %12 = vector.broadcast %cst_4 : f32 to vector<8x128xf32>
    %13 = arith.cmpf ogt, %1, %12 : vector<8x128xf32>
    %cst_5 = arith.constant 1.000000e+00 : f32
    %14 = vector.broadcast %cst_5 : f32 to vector<8x128xf32>
    %15 = arith.select %13, %1, %14 : vector<8x128xi1>, vector<8x128xf32>
    %cst_6 = arith.constant 0.000000e+00 : f32
    %16 = vector.broadcast %cst_6 : f32 to vector<8x128xf32>
    %17 = arith.cmpf ogt, %1, %16 : vector<8x128xf32>
    %18 = math.log %15 : vector<8x128xf32>
    %19 = arith.subf %18, %11 : vector<8x128xf32>
    %20 = arith.mulf %1, %19 : vector<8x128xf32>
    %cst_7 = arith.constant 0.000000e+00 : f32
    %21 = vector.broadcast %cst_7 : f32 to vector<8x128xf32>
    %22 = arith.select %17, %20, %21 : vector<8x128xi1>, vector<8x128xf32>
    %c0_8 = arith.constant 0 : index
    %c0_9 = arith.constant 0 : index
    %23 = vector.load %arg3[%c0_8, %c0_9] : memref<8x128xf32, #tpu.memory_space<vmem>>, vector<8x128xf32>
    tpu.vector_store %arg3[%c0_8, %c0_9], %22 {strides = array<i32>} : memref<8x128xf32, #tpu.memory_space<vmem>>, vector<8x128xf32>,
    return
  }
  func.func @transform_0(%arg0: i32) -> (i32, i32) {
    %c0_i32 = arith.constant 0 : i32
    %c0_i32_0 = arith.constant 0 : i32
    return %arg0, %c0_i32 : i32, i32
  }
  func.func @transform_1(%arg0: i32) -> (i32, i32) {
    %c0_i32 = arith.constant 0 : i32
    %c0_i32_0 = arith.constant 0 : i32
    return %arg0, %c0_i32 : i32, i32
  }
  func.func @transform_2(%arg0: i32) -> (i32, i32) {
    %c0_i32 = arith.constant 0 : i32
    %c0_i32_0 = arith.constant 0 : i32
    return %arg0, %c0_i32 : i32, i32
  }
}

</mosaic_0001>

<llo_original>
// kernel: tpu_custom_call.1
$region0: #{tpu_custom_call.1}
  #allocation0 [shape = 'u32[]', space=smem, size = 0x4, offset = 0x4, fixed_abs, tag = 'smem constant byte address 0x4 - core index']
  #allocation1 [shape = 'u32[144,128]{1,0:T(1,128)}', space=vmem, size = 0x12000, scoped, tag = 'internal scratch']
  %s0 = inlined_call_operand.hbm [shape: f32[8,128], index: 0, kind: input, shape index: {}]
  %s1 = inlined_call_operand.hbm [shape: f32[8,128], index: 1, kind: input, shape index: {}]
  %s2 = inlined_call_operand.hbm [shape: f32[8,128], index: 2, kind: output, shape index: {}]
  %s3 = sld [smem:[#allocation0]]
  $region26: #{tpu_custom_call.1} parent=0
    _
  %s5 = ssub.s32 1, %s3
  %s6 = scalar_select 0, %s5, %s3
  $region1: #{tpu_custom_call.1} parent=0
    #allocation2 [shape = 'u8[4096]{0}', space=vmem, size = 0x1000, scoped, tag = 'input window, operand 0, single buffered']
    #allocation3 [shape = 's32[1]{0}', space=sflag, size = 0x4, scoped, tag = 'scoped memory for tpu_custom_call.1']
    #allocation4 [shape = 's32[1]{0}', space=sflag, size = 0x4, scoped, tag = 'scoped memory for tpu_custom_call.1']
    #allocation5 [shape = 'u8[4096]{0}', space=vmem, size = 0x1000, scoped, tag = 'input window, operand 1, single buffered']
    #allocation6 [shape = 's32[1]{0}', space=sflag, size = 0x4, scoped, tag = 'scoped memory for tpu_custom_call.1']
    #allocation7 [shape = 'u8[4096]{0}', space=vmem, size = 0x1000, scoped, tag = 'output window, operand 0, single buffered']
    %7 = vsyncpa [#allocation3], 0
    %8 = vsyncpa [#allocation6], 0
    %9 = vsyncpa [#allocation4], 0
    // Predicated region
    $region2: #{tpu_custom_call.1} parent=1 // pred_check
      _
    $region3: #{tpu_custom_call.1} parent=1 // pred_check_branch
      %11 = sbr.rel (0) target = $region5
    $region4: #{tpu_custom_call.1} parent=1 // pred_region
      %s13 = ssub.s32 128, 128
      %14 = vsyncadd [#allocation3], %s13
      %s16 = sshll.u32 [#allocation2], 4
      %s17 = int_to_ptr.vmem [resolvable:$true] %s16
      %19 = dma.hbm_to_vmem [thread:$0]  %s0, 128, %s17, [#allocation3]
    $region5: #{tpu_custom_call.1} parent=1 // pred_fallthru
      _
    // Predicated region
    $region6: #{tpu_custom_call.1} parent=1 // pred_check
      _
    $region7: #{tpu_custom_call.1} parent=1 // pred_check_branch
      %21 = sbr.rel (0) target = $region9
    $region8: #{tpu_custom_call.1} parent=1 // pred_region
      %s23 = ssub.s32 128, 128
      %24 = vsyncadd [#allocation6], %s23
      %s26 = sshll.u32 [#allocation5], 4
      %s27 = int_to_ptr.vmem [resolvable:$true] %s26
      %29 = dma.hbm_to_vmem [thread:$0]  %s1, 128, %s27, [#allocation6]
    $region9: #{tpu_custom_call.1} parent=1 // pred_fallthru
      _
    // Predicated region
    $region10: #{tpu_custom_call.1} parent=1 // pred_check
      _
    $region11: #{tpu_custom_call.1} parent=1 // pred_check_branch
      %31 = sbr.rel (0) target = $region13
    $region12: #{tpu_custom_call.1} parent=1 // pred_region
      %32 = dma.done [#allocation3], 128
    $region13: #{tpu_custom_call.1} parent=1 // pred_fallthru
      _
    // Predicated region
    $region14: #{tpu_custom_call.1} parent=1 // pred_check
      _
    $region15: #{tpu_custom_call.1} parent=1 // pred_check_branch
      %34 = sbr.rel (0) target = $region17
    $region16: #{tpu_custom_call.1} parent=1 // pred_region
      %35 = dma.done [#allocation6], 128
    $region17: #{tpu_custom_call.1} parent=1 // pred_fallthru
      _
    %v36 = vld [vmem:[#allocation2] sm:$0xff]
    %v37 = vld [vmem:[#allocation5] sm:$0xff]
    %38 = vmax.xlane.f32.xlu0 %v36
    %v39 = vpop.xlane.xlu0 %38
    %v40 = vsub.f32 %v36, %v39
    %v41 = vmul.f32 %v40, 1.442695
    %v42 = vpow.pop %v41
    %43 = vadd.xlane.f32.xlu0 %v42
    %v44 = vpop.xlane.xlu0 %43
    %v45 = vlog2.pop %v44
    %v46 = vmul.f32 %v45, 0.6931472
    %v47 = vsub.f32 %v40, %v46
    %vm48 = vcmp.gt.f32.partialorder %v37, 0.0
    %v49 = vsel %vm48, %v37, 1.0
    %v50 = vlog2.pop %v49
    %v51 = vmul.f32 %v50, 0.6931472
    %v52 = vsub.f32 %v51, %v47
    %v53 = vmul.f32 %v37, %v52
    %v54 = vsel %vm48, %v53, 0.0
    %55 = vst [vmem:[#allocation7] sm:$0xff] %v54
    // Predicated region
    $region18: #{tpu_custom_call.1} parent=1 // pred_check
      _
    $region19: #{tpu_custom_call.1} parent=1 // pred_check_branch
      %57 = sbr.rel (0) target = $region21
    $region20: #{tpu_custom_call.1} parent=1 // pred_region
      %s59 = ssub.s32 128, 128
      %60 = vsyncadd [#allocation4], %s59
      %s62 = sshll.u32 [#allocation7], 4
      %s63 = int_to_ptr.vmem [resolvable:$true] %s62
      %65 = dma.vmem_to_hbm [thread:$0]  %s63, 128, %s2, [#allocation4]
    $region21: #{tpu_custom_call.1} parent=1 // pred_fallthru
      _
    // Predicated region
    $region22: #{tpu_custom_call.1} parent=1 // pred_check
      _
    $region23: #{tpu_custom_call.1} parent=1 // pred_check_branch
      %67 = sbr.rel (0) target = $region25
    $region24: #{tpu_custom_call.1} parent=1 // pred_region
      %68 = dma.done [#allocation4], 128
    $region25: #{tpu_custom_call.1} parent=1 // pred_fallthru
      _
    %69 = vsyncpa [#allocation3], 1
    %70 = vsyncpa [#allocation6], 1
    %71 = vsyncpa [#allocation4], 1

</llo_original>
